<compile_context>
chip_gen: v7x
topology: tpu7x:2x2x1
jax: 0.10.0
libtpu: 0.0.40
codegen_flags: <defaults>
</compile_context>

<pallas_src>
import functools

import jax
import jax.numpy as jnp
from jax.experimental import pallas as pl
from jax.experimental.pallas import tpu as pltpu

N_CLASSES = 5
EPS = 1e-5
LANE = 128           # vreg lane width
MAX_TILE = 16384     # pixels per grid step (power-of-two multiple of LANE)


def _pow2_floor(x: int) -> int:
    return 1 << (max(int(x), 1).bit_length() - 1)


def _mios_counts_kernel(pred_ref, lab_ref, inter_ref, union_ref, *, hw):
    # Zero the per-batch accumulators on the first pixel tile of each batch.
    @pl.when(pl.program_id(1) == 0)
    def _():
        inter_ref[...] = jnp.zeros_like(inter_ref)
        union_ref[...] = jnp.zeros_like(union_ref)

    p = pred_ref[0]                       # (C, T) logits (f32 or bf16)
    if p.dtype != jnp.float32:
        p = p.astype(jnp.float32)         # per-vreg upcast (v5e has no bf16 VPU)
    lab = lab_ref[0]                      # (1, T) int32 labels
    C, T = p.shape

    # Global pixel position -> validity mask for the (possibly partial) last
    # tile.  Handles ragged H*W without any wrapper-side padding / HBM copies.
    pos = pl.program_id(1) * T + jax.lax.broadcasted_iota(jnp.int32, (1, T), 1)
    valid = pos < hw                      # (1, T)

    # First-occurrence argmax over the class (sublane) axis.
    cls = jax.lax.broadcasted_iota(jnp.int32, (C, T), 0)          # row = class id
    mx = jnp.max(p, axis=0, keepdims=True)                        # (1, T)
    am = jnp.min(jnp.where(p == mx, cls, C), axis=0, keepdims=True)  # (1, T)

    # Fold the validity mask once at (1, T) width instead of AND-ing every
    # (C, T) mask: invalid pixels map to class id C, which never matches a
    # real class, so they contribute 0 to both intersection and union.
    am = jnp.where(valid, am, C)
    lab = jnp.where(valid, lab, C)

    pred_idx = am == cls                  # (C, T)
    lab_idx = lab == cls                  # (C, T)

    inter_m = jnp.logical_and(pred_idx, lab_idx).astype(jnp.int32)   # (C, T)
    union_m = jnp.logical_or(pred_idx, lab_idx).astype(jnp.int32)    # (C, T)

    # Log-tree lane fold down to (C, LANE).  T is a power-of-two multiple of
    # LANE, so every slice stays lane-group aligned: pure elementwise VPU adds.
    while inter_m.shape[1] > LANE:
        h = inter_m.shape[1] // 2
        inter_m = inter_m[:, :h] + inter_m[:, h:]
        union_m = union_m[:, :h] + union_m[:, h:]

    inter_ref[0] += inter_m
    union_ref[0] += union_m


def mios_forward(pred, labels, ios_class, eps=EPS):
    """Reproduces mIOS.forward: returns (scalar mean, updated ios_class buffer)."""
    N, C, H, W = pred.shape
    HW = H * W

    # Pixel tile: power-of-two multiple of LANE, capped by MAX_TILE and by a
    # ~4 MiB budget for the double-buffered pred tile (safe on every chip).
    bytes_per_px = C * jnp.dtype(pred.dtype).itemsize
    vmem_cap_px = max(_pow2_floor((4 << 20) // (2 * bytes_per_px)), LANE)
    tile = LANE * pl.next_power_of_2(pl.cdiv(HW, LANE))
    tile = min(tile, MAX_TILE, vmem_cap_px)
    n_tiles = pl.cdiv(HW, tile)

    pred_r = pred.reshape(N, C, HW)                    # free reshape, no HBM copy
    lab_r = labels.reshape(N, 1, HW).astype(jnp.int32)

    inter_l, union_l = pl.pallas_call(
        functools.partial(_mios_counts_kernel, hw=HW),
        out_shape=(jax.ShapeDtypeStruct((N, C, LANE), jnp.int32),
                   jax.ShapeDtypeStruct((N, C, LANE), jnp.int32)),
        grid_spec=pltpu.PrefetchScalarGridSpec(
            num_scalar_prefetch=0,
            grid=(N, n_tiles),
            in_specs=[pl.BlockSpec((1, C, tile), lambda n, i: (n, 0, i)),
                      pl.BlockSpec((1, 1, tile), lambda n, i: (n, 0, i))],
            out_specs=(pl.BlockSpec((1, C, LANE), lambda n, i: (n, 0, 0)),
                       pl.BlockSpec((1, C, LANE), lambda n, i: (n, 0, 0)))),
        compiler_params=pltpu.CompilerParams(
            dimension_semantics=("parallel", "arbitrary")),   # batch ||, pixel reduce
    )(pred_r, lab_r)

    # Exact integer totals, then the scalar glue mirroring the PyTorch forward.
    inter = jnp.sum(inter_l, axis=(0, 2))              # (C,) int32, exact
    union = jnp.sum(union_l, axis=(0, 2))              # (C,) int32, exact
    ios = inter.astype(jnp.float32) / (union.astype(jnp.float32) + jnp.float32(eps))
    new_ios_class = ios_class + ios                    # buffer accumulation (+=)
    return jnp.mean(new_ios_class), new_ios_class


def _reference(pred, labels, ios_class, eps=EPS):
    """Pure-JAX reference mirroring the PyTorch forward."""
    am = jnp.argmax(pred, axis=1)
    out = ios_class
    for c in range(pred.shape[1]):
        pi = am == c
        li = labels == c
        inter = jnp.sum(jnp.logical_and(pi, li)).astype(jnp.float32)
        union = jnp.sum(jnp.logical_or(pi, li)).astype(jnp.float32)
        out = out.at[c].add(inter / (union + eps))
    return jnp.mean(out), out


if __name__ == "__main__":
    key = jax.random.PRNGKey(0)
    k1, k2 = jax.random.split(key)

    N, C, H, W = 2, N_CLASSES, 16, 16
    pred = jax.random.normal(k1, (N, C, H, W), dtype=jnp.float32)
    labels = jax.random.randint(k2, (N, H, W), 0, N_CLASSES, dtype=jnp.int32)

    # nn.Parameter(torch.zeros(n_classes)), requires_grad=False.
    ios_class = jnp.zeros((N_CLASSES,), dtype=jnp.float32)

    out, new_ios_class = mios_forward(pred, labels, ios_class)
    out = jax.block_until_ready(out)

    ref_out, ref_buf = _reference(pred, labels, ios_class)
    assert jnp.allclose(out, ref_out, rtol=1e-5, atol=1e-6), (out, ref_out)
    assert jnp.allclose(new_ios_class, ref_buf, rtol=1e-5, atol=1e-6)

    print("KERNEL_OK")
</pallas_src>

<mosaic_0001>
module attributes {stable_mosaic.version = 11 : i64} {
  func.func @_mios_counts_kernel(%arg0: i32, %arg1: i32, %arg2: memref<1x5x256xf32, #tpu.memory_space<vmem>>, %arg3: memref<1x1x256xi32, #tpu.memory_space<vmem>>, %arg4: memref<1x5x128xi32, #tpu.memory_space<vmem>>, %arg5: memref<1x5x128xi32, #tpu.memory_space<vmem>>) attributes {dimension_semantics = [#tpu.dimension_semantics<parallel>, #tpu.dimension_semantics<arbitrary>], iteration_bounds = array<i64: 2, 1>, scalar_prefetch = 0 : i64, scratch_operands = 0 : i64, tpu.core_type = #tpu.core_type<tc>, window_params = [{transform_indices = @transform_0, window_bounds = array<i64: 1, 5, 256>}, {transform_indices = @transform_1, window_bounds = array<i64: 1, 1, 256>}, {transform_indices = @transform_2, window_bounds = array<i64: 1, 5, 128>}, {transform_indices = @transform_3, window_bounds = array<i64: 1, 5, 128>}]} {
    %c0_i32 = arith.constant 0 : i32
    %0 = arith.cmpi eq, %arg1, %c0_i32 : i32
    %1 = arith.extui %0 : i1 to i32
    %c0_i32_0 = arith.constant 0 : i32
    %2 = arith.cmpi ne, %1, %c0_i32_0 : i32
    scf.if %2 {
      %c0_i32_22 = arith.constant 0 : i32
      %52 = vector.broadcast %c0_i32_22 : i32 to vector<1x5x128xi32>
      %c0_23 = arith.constant 0 : index
      %c0_24 = arith.constant 0 : index
      %c0_25 = arith.constant 0 : index
      %53 = vector.load %arg4[%c0_23, %c0_24, %c0_25] : memref<1x5x128xi32, #tpu.memory_space<vmem>>, vector<1x5x128xi32>
      tpu.vector_store %arg4[%c0_23, %c0_24, %c0_25], %52 {strides = array<i32>} : memref<1x5x128xi32, #tpu.memory_space<vmem>>, vector<1x5x128xi32>,
      %c0_i32_26 = arith.constant 0 : i32
      %54 = vector.broadcast %c0_i32_26 : i32 to vector<1x5x128xi32>
      %c0_27 = arith.constant 0 : index
      %c0_28 = arith.constant 0 : index
      %c0_29 = arith.constant 0 : index
      %55 = vector.load %arg5[%c0_27, %c0_28, %c0_29] : memref<1x5x128xi32, #tpu.memory_space<vmem>>, vector<1x5x128xi32>
      tpu.vector_store %arg5[%c0_27, %c0_28, %c0_29], %54 {strides = array<i32>} : memref<1x5x128xi32, #tpu.memory_space<vmem>>, vector<1x5x128xi32>,
    } else {
    }
    %c0 = arith.constant 0 : index
    %c0_1 = arith.constant 0 : index
    %c0_2 = arith.constant 0 : index
    %3 = vector.load %arg2[%c0, %c0_1, %c0_2] : memref<1x5x256xf32, #tpu.memory_space<vmem>>, vector<1x5x256xf32>
    %4 = vector.shape_cast %3 : vector<1x5x256xf32> to vector<5x256xf32>
    %c0_3 = arith.constant 0 : index
    %c0_4 = arith.constant 0 : index
    %c0_5 = arith.constant 0 : index
    %5 = vector.load %arg3[%c0_3, %c0_4, %c0_5] : memref<1x1x256xi32, #tpu.memory_space<vmem>>, vector<1x1x256xi32>
    %6 = vector.shape_cast %5 : vector<1x1x256xi32> to vector<1x256xi32>
    %c256_i32 = arith.constant 256 : i32
    %7 = arith.muli %arg1, %c256_i32 : i32
    %8 = tpu.iota {dimensions = array<i32: 1>} : vector<1x256xi32>
    %9 = vector.broadcast %7 : i32 to vector<1x256xi32>
    %10 = arith.addi %9, %8 : vector<1x256xi32>
    %c256_i32_6 = arith.constant 256 : i32
    %11 = vector.broadcast %c256_i32_6 : i32 to vector<1x256xi32>
    %12 = arith.cmpi slt, %10, %11 : vector<1x256xi32>
    %13 = tpu.iota {dimensions = array<i32: 0>} : vector<5x256xi32>
    %cst = arith.constant dense<0xFF800000> : vector<256xf32>
    %14 = vector.multi_reduction <maximumf>, %4, %cst [0] : vector<5x256xf32> to vector<256xf32>
    %15 = vector.shape_cast %14 : vector<256xf32> to vector<1x256xf32>
    %16 = vector.broadcast %15 : vector<1x256xf32> to vector<5x256xf32>
    %17 = arith.cmpf oeq, %4, %16 : vector<5x256xf32>
    %c5_i32 = arith.constant 5 : i32
    %18 = vector.broadcast %c5_i32 : i32 to vector<5x256xi32>
    %19 = arith.select %17, %13, %18 : vector<5x256xi1>, vector<5x256xi32>
    %cst_7 = arith.constant dense<2147483647> : vector<256xi32>
    %20 = vector.multi_reduction <minsi>, %19, %cst_7 [0] : vector<5x256xi32> to vector<256xi32>
    %21 = vector.shape_cast %20 : vector<256xi32> to vector<1x256xi32>
    %c5_i32_8 = arith.constant 5 : i32
    %22 = vector.broadcast %c5_i32_8 : i32 to vector<1x256xi32>
    %23 = arith.select %12, %21, %22 : vector<1x256xi1>, vector<1x256xi32>
    %c5_i32_9 = arith.constant 5 : i32
    %24 = vector.broadcast %c5_i32_9 : i32 to vector<1x256xi32>
    %25 = arith.select %12, %6, %24 : vector<1x256xi1>, vector<1x256xi32>
    %26 = vector.broadcast %23 : vector<1x256xi32> to vector<5x256xi32>
    %27 = arith.cmpi eq, %26, %13 : vector<5x256xi32>
    %28 = vector.broadcast %25 : vector<1x256xi32> to vector<5x256xi32>
    %29 = arith.cmpi eq, %28, %13 : vector<5x256xi32>
    %30 = arith.andi %27, %29 : vector<5x256xi1>
    %31 = arith.extui %30 : vector<5x256xi1> to vector<5x256xi32>
    %32 = arith.ori %27, %29 : vector<5x256xi1>
    %33 = arith.extui %32 : vector<5x256xi1> to vector<5x256xi32>
    %34 = vector.extract_strided_slice %31 {offsets = [0, 0], sizes = [5, 128], strides = [1, 1]} : vector<5x256xi32> to vector<5x128xi32>
    %35 = vector.extract_strided_slice %31 {offsets = [0, 128], sizes = [5, 128], strides = [1, 1]} : vector<5x256xi32> to vector<5x128xi32>
    %36 = arith.addi %34, %35 : vector<5x128xi32>
    %37 = vector.extract_strided_slice %33 {offsets = [0, 0], sizes = [5, 128], strides = [1, 1]} : vector<5x256xi32> to vector<5x128xi32>
    %38 = vector.extract_strided_slice %33 {offsets = [0, 128], sizes = [5, 128], strides = [1, 1]} : vector<5x256xi32> to vector<5x128xi32>
    %39 = arith.addi %37, %38 : vector<5x128xi32>
    %c0_10 = arith.constant 0 : index
    %c0_11 = arith.constant 0 : index
    %c0_12 = arith.constant 0 : index
    %40 = vector.load %arg4[%c0_10, %c0_11, %c0_12] : memref<1x5x128xi32, #tpu.memory_space<vmem>>, vector<1x5x128xi32>
    %41 = vector.shape_cast %40 : vector<1x5x128xi32> to vector<5x128xi32>
    %42 = arith.addi %41, %36 : vector<5x128xi32>
    %c0_13 = arith.constant 0 : index
    %c0_14 = arith.constant 0 : index
    %c0_15 = arith.constant 0 : index
    %43 = vector.load %arg4[%c0_13, %c0_14, %c0_15] : memref<1x5x128xi32, #tpu.memory_space<vmem>>, vector<1x5x128xi32>
    %44 = vector.shape_cast %43 : vector<1x5x128xi32> to vector<5x128xi32>
    %45 = vector.shape_cast %42 : vector<5x128xi32> to vector<1x5x128xi32>
    tpu.vector_store %arg4[%c0_13, %c0_14, %c0_15], %45 {strides = array<i32>} : memref<1x5x128xi32, #tpu.memory_space<vmem>>, vector<1x5x128xi32>,
    %c0_16 = arith.constant 0 : index
    %c0_17 = arith.constant 0 : index
    %c0_18 = arith.constant 0 : index
    %46 = vector.load %arg5[%c0_16, %c0_17, %c0_18] : memref<1x5x128xi32, #tpu.memory_space<vmem>>, vector<1x5x128xi32>
    %47 = vector.shape_cast %46 : vector<1x5x128xi32> to vector<5x128xi32>
    %48 = arith.addi %47, %39 : vector<5x128xi32>
    %c0_19 = arith.constant 0 : index
    %c0_20 = arith.constant 0 : index
    %c0_21 = arith.constant 0 : index
    %49 = vector.load %arg5[%c0_19, %c0_20, %c0_21] : memref<1x5x128xi32, #tpu.memory_space<vmem>>, vector<1x5x128xi32>
    %50 = vector.shape_cast %49 : vector<1x5x128xi32> to vector<5x128xi32>
    %51 = vector.shape_cast %48 : vector<5x128xi32> to vector<1x5x128xi32>
    tpu.vector_store %arg5[%c0_19, %c0_20, %c0_21], %51 {strides = array<i32>} : memref<1x5x128xi32, #tpu.memory_space<vmem>>, vector<1x5x128xi32>,
    return
  }
  func.func @transform_0(%arg0: i32, %arg1: i32) -> (i32, i32, i32) {
    %c0_i32 = arith.constant 0 : i32
    %c0_i32_0 = arith.constant 0 : i32
    return %arg0, %c0_i32, %arg1 : i32, i32, i32
  }
  func.func @transform_1(%arg0: i32, %arg1: i32) -> (i32, i32, i32) {
    %c0_i32 = arith.constant 0 : i32
    %c0_i32_0 = arith.constant 0 : i32
    return %arg0, %c0_i32, %arg1 : i32, i32, i32
  }
  func.func @transform_2(%arg0: i32, %arg1: i32) -> (i32, i32, i32) {
    %c0_i32 = arith.constant 0 : i32
    %c0_i32_0 = arith.constant 0 : i32
    %c0_i32_1 = arith.constant 0 : i32
    return %arg0, %c0_i32, %c0_i32_0 : i32, i32, i32
  }
  func.func @transform_3(%arg0: i32, %arg1: i32) -> (i32, i32, i32) {
    %c0_i32 = arith.constant 0 : i32
    %c0_i32_0 = arith.constant 0 : i32
    %c0_i32_1 = arith.constant 0 : i32
    return %arg0, %c0_i32, %c0_i32_0 : i32, i32, i32
  }
}

</mosaic_0001>

<llo_original>
// kernel: tpu_custom_call.1
$region0: #{tpu_custom_call.1}
  #allocation0 [shape = 'u32[]', space=smem, size = 0x4, offset = 0x4, fixed_abs, tag = 'smem constant byte address 0x4 - core index']
  #allocation1 [shape = 'u32[144,128]{1,0:T(1,128)}', space=vmem, size = 0x12000, scoped, tag = 'internal scratch']
  %s0 = inlined_call_operand.vmem [shape: f32[2,5,256], index: 0, kind: input, shape index: {}]
  %s1 = inlined_call_operand.vmem [shape: s32[2,1,256], index: 1, kind: input, shape index: {}]
  %s2 = inlined_call_operand.vmem [shape: s32[2,5,128], index: 2, kind: output, shape index: {0}]
  %s3 = inlined_call_operand.vmem [shape: s32[2,5,128], index: 3, kind: output, shape index: {1}]
  %4 = xla_tuple %s2, %s3
  %s5 = sld [smem:[#allocation0]]
  $region53: #{tpu_custom_call.1} parent=0
    _
  %s7 = ssub.s32 1, %s5
  %s8 = scalar_select 0, %s7, %s5
  loop: start=0, step=1, limit=4
  $region2: #{tpu_custom_call.1} parent=0 // loop_pre_header
    _
  $region3: #{tpu_custom_call.1} parent=0 // loop_header
    %s10 = sphi 0, %s14
    %p11 = scmp.ge.s32.totalorder %s10, 4
    %s17 = sphi 0, %s29
    %s18 = sphi 0, %s25
    %s19 = sphi 0, %s17
    %s20 = sphi 0, %s18
    %s21 = sphi 0, %s19
    %s22 = sphi 0, %s20
    %s34 = sphi 0, %s36
    %s37 = sphi 0, %s34
    %s38 = sphi 0, %s37
    %s54 = sphi 0, %s38
    %s62 = sphi 0, %s64
    %s65 = sphi 0, %s62
    %s66 = sphi 0, %s65
    %s82 = sphi 0, %s66
    %s88 = sphi 0, %s90
    %s91 = sphi 0, %s88
    %s92 = sphi 0, %s91
    %s108 = sphi 0, %s92
    %s114 = sphi 0, %s116
    %s117 = sphi 0, %s114
    %s118 = sphi 0, %s117
    %s134 = sphi 0, %s118
  $region4: #{tpu_custom_call.1} parent=0 // loop_header_branch
    %13 = sbr.rel (%p11) target = $region8
  $region5: #{tpu_custom_call.1} parent=0 // loop_body
    %s15 = ssub.s32 %s10, 1
    %s16 = ssub.s32 %s10, 2
    %s23 = sadd.s32 1, %s18
    %p24 = scmp.ge.s32.totalorder %s23, 1
    %s25 = scalar_select %p24, 0, %s23
    %s26 = sadd.s32 1, %s17
    %s27 = scalar_select %p24, %s26, %s17
    %p28 = scmp.ge.s32.totalorder %s27, 2
    %s29 = scalar_select %p28, 0, %s27
    %s30 = ssub.s32 %s17, %s29
    %s31 = ssub.s32 %s18, %s25
    %s32 = sor.u32 %s30, %s31
    %p33 = scmp.eq.s32.totalorder %s32, 0
    %s35 = sadd.s32 %s34, 1
    %s36 = scalar_select %p33, %s34, %s35
    %p39 = pneg %p33
    %p40 = scmp.eq.s32.totalorder %s10, 1
    %p41 = por %p39, %p40
    %p42 = scmp.ne.s32.totalorder %s34, %s37
    %p43 = scmp.eq.s32.totalorder %s10, 0
    %p44 = por %p42, %p43
    %p45 = scmp.ne.s32.totalorder %s34, %s37
    %p46 = scmp.eq.s32.totalorder %s15, 1
    %p47 = por %p45, %p46
    %p48 = scmp.ne.s32.totalorder %s37, %s38
    %p49 = scmp.eq.s32.totalorder %s15, 0
    %p50 = por %p48, %p49
    %p51 = scmp.ne.s32.totalorder %s37, %s38
    %p52 = scmp.eq.s32.totalorder %s16, 1
    %p53 = por %p51, %p52
    %p55 = scmp.ne.s32.totalorder %s38, %s54
    %p56 = scmp.eq.s32.totalorder %s16, 0
    %p57 = por %p55, %p56
    %s58 = ssub.s32 %s17, %s29
    %s59 = ssub.s32 %s18, %s25
    %s60 = sor.u32 %s58, %s59
    %p61 = scmp.eq.s32.totalorder %s60, 0
    %s63 = sadd.s32 %s62, 1
    %s64 = scalar_select %p61, %s62, %s63
    %p67 = pneg %p61
    %p68 = scmp.eq.s32.totalorder %s10, 1
    %p69 = por %p67, %p68
    %p70 = scmp.ne.s32.totalorder %s62, %s65
    %p71 = scmp.eq.s32.totalorder %s10, 0
    %p72 = por %p70, %p71
    %p73 = scmp.ne.s32.totalorder %s62, %s65
    %p74 = scmp.eq.s32.totalorder %s15, 1
    %p75 = por %p73, %p74
    %p76 = scmp.ne.s32.totalorder %s65, %s66
    %p77 = scmp.eq.s32.totalorder %s15, 0
    %p78 = por %p76, %p77
    %p79 = scmp.ne.s32.totalorder %s65, %s66
    %p80 = scmp.eq.s32.totalorder %s16, 1
    %p81 = por %p79, %p80
    %p83 = scmp.ne.s32.totalorder %s66, %s82
    %p84 = scmp.eq.s32.totalorder %s16, 0
    %p85 = por %p83, %p84
    %s86 = ssub.s32 %s17, %s29
    %p87 = scmp.eq.s32.totalorder %s86, 0
    %s89 = sadd.s32 %s88, 1
    %s90 = scalar_select %p87, %s88, %s89
    %p93 = pneg %p87
    %p94 = scmp.eq.s32.totalorder %s10, 1
    %p95 = por %p93, %p94
    %p96 = scmp.ne.s32.totalorder %s88, %s91
    %p97 = scmp.eq.s32.totalorder %s10, 0
    %p98 = por %p96, %p97
    %p99 = scmp.ne.s32.totalorder %s88, %s91
    %p100 = scmp.eq.s32.totalorder %s15, 1
    %p101 = por %p99, %p100
    %p102 = scmp.ne.s32.totalorder %s91, %s92
    %p103 = scmp.eq.s32.totalorder %s15, 0
    %p104 = por %p102, %p103
    %p105 = scmp.ne.s32.totalorder %s91, %s92
    %p106 = scmp.eq.s32.totalorder %s16, 1
    %p107 = por %p105, %p106
    %p109 = scmp.ne.s32.totalorder %s92, %s108
    %p110 = scmp.eq.s32.totalorder %s16, 0
    %p111 = por %p109, %p110
    %s112 = ssub.s32 %s17, %s29
    %p113 = scmp.eq.s32.totalorder %s112, 0
    %s115 = sadd.s32 %s114, 1
    %s116 = scalar_select %p113, %s114, %s115
    %p119 = pneg %p113
    %p120 = scmp.eq.s32.totalorder %s10, 1
    %p121 = por %p119, %p120
    %p122 = scmp.ne.s32.totalorder %s114, %s117
    %p123 = scmp.eq.s32.totalorder %s10, 0
    %p124 = por %p122, %p123
    %p125 = scmp.ne.s32.totalorder %s114, %s117
    %p126 = scmp.eq.s32.totalorder %s15, 1
    %p127 = por %p125, %p126
    %p128 = scmp.ne.s32.totalorder %s117, %s118
    %p129 = scmp.eq.s32.totalorder %s15, 0
    %p130 = por %p128, %p129
    %p131 = scmp.ne.s32.totalorder %s117, %s118
    %p132 = scmp.eq.s32.totalorder %s16, 1
    %p133 = por %p131, %p132
    %p135 = scmp.ne.s32.totalorder %s118, %s134
    %p136 = scmp.eq.s32.totalorder %s16, 0
    %p137 = por %p135, %p136
    %p138 = scmp.le.s32.totalorder 1, %s10
    %p139 = scmp.lt.s32.totalorder %s10, 3
    %p140 = pnand %p138, %p139
    %p141 = pneg %p140
    // Predicated region
    $region9: #{tpu_custom_call.1} parent=5 // pred_check
      _
    $region10: #{tpu_custom_call.1} parent=5 // pred_check_branch
      %143 = sbr.rel (%p140) target = $region12
    $region11: #{tpu_custom_call.1} parent=5 // pred_region
      %s144 = ssub.s32 %s10, 1
    $region12: #{tpu_custom_call.1} parent=5 // pred_fallthru
      _
    %p145 = scmp.lt.s32.totalorder %s10, 2
    // Predicated region
    $region13: #{tpu_custom_call.1} parent=5 // pred_check
      %p146 = pneg %p145
    $region14: #{tpu_custom_call.1} parent=5 // pred_check_branch
      %148 = sbr.rel (%p146) target = $region16
    $region15: #{tpu_custom_call.1} parent=5 // pred_region
      // Predicated region
      $region17: #{tpu_custom_call.1} parent=15 // pred_check
        %p149 = pneg %p44
      $region18: #{tpu_custom_call.1} parent=15 // pred_check_branch
        %151 = sbr.rel (%p149) target = $region20
      $region19: #{tpu_custom_call.1} parent=15 // pred_region
        %s152 = smul.u32 2, %s18
        %p153 = scmp.lt.s32.totalorder %s17, 1
        %s154 = scalar_select %p153, %s17, 1
        %p155 = scmp.lt.s32.totalorder %s152, 1
        %s156 = scalar_select %p155, %s152, 1
        %s157 = smul.addr %s154, 2
        %s158 = sadd.s32 %s156, %s157
        %s159 = smul.addr %s158, 8
        %s160 = scalar_lea.vmem %s0, %s159
        %s161 = smul.u32 2, %s18
      $region20: #{tpu_custom_call.1} parent=15 // pred_fallthru
        _
      // Predicated region
      $region21: #{tpu_custom_call.1} parent=15 // pred_check
        %p162 = pneg %p72
      $region22: #{tpu_custom_call.1} parent=15 // pred_check_branch
        %164 = sbr.rel (%p162) target = $region24
      $region23: #{tpu_custom_call.1} parent=15 // pred_region
        %s165 = smul.u32 2, %s18
        %p166 = scmp.lt.s32.totalorder %s17, 1
        %s167 = scalar_select %p166, %s17, 1
        %p168 = scmp.lt.s32.totalorder %s165, 1
        %s169 = scalar_select %p168, %s165, 1
        %s170 = smul.addr %s167, 2
        %s171 = sadd.s32 %s169, %s170
        %s172 = scalar_lea.vmem %s1, %s171
        %s173 = smul.u32 2, %s18
      $region24: #{tpu_custom_call.1} parent=15 // pred_fallthru
        _
    $region16: #{tpu_custom_call.1} parent=5 // pred_fallthru
      _
    %p174 = scmp.le.s32.totalorder 1, %s10
    %p175 = scmp.lt.s32.totalorder %s10, 3
    %p176 = pnand %p174, %p175
    %p177 = pneg %p176
    // Predicated region
    $region25: #{tpu_custom_call.1} parent=5 // pred_check
      _
    $region26: #{tpu_custom_call.1} parent=5 // pred_check_branch
      %179 = sbr.rel (%p176) target = $region28
    $region27: #{tpu_custom_call.1} parent=5 // pred_region
      %s180 = ssub.s32 %s10, 1
      %s181 = smul.u32 2, %s20
      %p182 = scmp.lt.s32.totalorder %s19, 1
      %s183 = scalar_select %p182, %s19, 1
      %p184 = scmp.lt.s32.totalorder %s181, 1
      %s185 = scalar_select %p184, %s181, 1
      %s186 = smul.addr %s183, 2
      %s187 = sadd.s32 %s185, %s186
      %s188 = smul.addr %s187, 8
      %s189 = scalar_lea.vmem %s0, %s188
      %p190 = pneg %p50
      %p191 = pneg %p47
      %s192 = smul.u32 2, %s20
      %p193 = scmp.lt.s32.totalorder %s19, 1
      %s194 = scalar_select %p193, %s19, 1
      %p195 = scmp.lt.s32.totalorder %s192, 1
      %s196 = scalar_select %p195, %s192, 1
      %s197 = smul.addr %s194, 2
      %s198 = sadd.s32 %s196, %s197
      %s199 = scalar_lea.vmem %s1, %s198
      %p200 = pneg %p78
      %p201 = pneg %p75
      %p202 = pneg %p104
      %p203 = pneg %p101
      %p204 = scmp.lt.s32.totalorder %s19, 1
      %s205 = scalar_select %p204, %s19, 1
      %s206 = smul.addr %s205, 8
      %s207 = scalar_lea.vmem %s2, %s206
      %p208 = pneg %p130
      %p209 = pneg %p127
      %p210 = scmp.lt.s32.totalorder %s19, 1
      %s211 = scalar_select %p210, %s19, 1
      %s212 = smul.addr %s211, 8
      %s213 = scalar_lea.vmem %s3, %s212
      %s214 = smul.u32 2, %s20
      %p215 = scmp.lt.s32.totalorder %s19, 1
      %s216 = scalar_select %p215, %s19, 1
      %p217 = scmp.lt.s32.totalorder %s214, 1
      %s218 = scalar_select %p217, %s214, 1
      %s219 = smul.addr %s216, 2
      %s220 = sadd.s32 %s218, %s219
      %s221 = smul.addr %s220, 8
      %s222 = scalar_lea.vmem %s0, %s221
      %s223 = smul.u32 2, %s20
      %s224 = smul.u32 2, %s20
      %p225 = scmp.lt.s32.totalorder %s19, 1
      %s226 = scalar_select %p225, %s19, 1
      %p227 = scmp.lt.s32.totalorder %s224, 1
      %s228 = scalar_select %p227, %s224, 1
      %s229 = smul.addr %s226, 2
      %s230 = sadd.s32 %s228, %s229
      %s231 = scalar_lea.vmem %s1, %s230
      %s232 = smul.u32 2, %s20
      %p233 = scmp.lt.s32.totalorder %s19, 1
      %s234 = scalar_select %p233, %s19, 1
      %s235 = smul.addr %s234, 8
      %s236 = scalar_lea.vmem %s2, %s235
      %p237 = scmp.lt.s32.totalorder %s19, 1
      %s238 = scalar_select %p237, %s19, 1
      %s239 = smul.addr %s238, 8
      %s240 = scalar_lea.vmem %s3, %s239
      %p241 = scmp.eq.s32.totalorder %s20, 0
      // Predicated region
      $region29: #{tpu_custom_call.1} parent=27 // pred_check
        %p242 = pneg %p241
      $region30: #{tpu_custom_call.1} parent=27 // pred_check_branch
        %244 = sbr.rel (%p242) target = $region32
      $region31: #{tpu_custom_call.1} parent=27 // pred_region
        %245 = vst [vmem:[%s236] sm:$0x1f] 0
        %246 = vst [vmem:[%s240] sm:$0x1f] 0
      $region32: #{tpu_custom_call.1} parent=27 // pred_fallthru
        _
      %v247 = vld [vmem:[%s222] sm:$0x1f]
      %v248 = vld [vmem:[%s222 + $0x8] sm:$0x1f]
      %v249 = vld [vmem:[%s231] sm:$0x3]
      %s250 = smul.u32 %s20, 256
      %v251 = vlaneseq
      %v252 = vand.u32 %v251, 127
      %v253 = vadd.s32 %v252, 128
      %v254 = vstv %s250
      %v255 = vadd.s32 %v254, %v252
      %v256 = vadd.s32 %v254, %v253
      %vm257 = vcmp.lt.s32.totalorder %v255, 256
      %vm258 = vcmp.lt.s32.totalorder %v256, 256
      %v259 = vlaneseq
      %v260 = vshrl.u32 %v259, 7
      %vm261 = vcmask 1044480
      %v262 = vsel %vm261, %v247, -inf
      %v263 = vrot.slane %v262, 4
      %v264 = vmax.f32 %v262, %v263
      %v265 = vrot.slane %v264, 2
      %v266 = vmax.f32 %v264, %v265
      %v267 = vrot.slane %v266, 1
      %v268 = vmax.f32 %v266, %v267
      %v269 = vsel %vm261, %v248, -inf
      %v270 = vrot.slane %v269, 4
      %v271 = vmax.f32 %v269, %v270
      %v272 = vrot.slane %v271, 2
      %v273 = vmax.f32 %v271, %v272
      %v274 = vrot.slane %v273, 1
      %v275 = vmax.f32 %v273, %v274
      %vm276 = vcmp.eq.f32.partialorder %v247, %v268
      %vm277 = vcmp.eq.f32.partialorder %v248, %v275
      %v278 = vsel %vm276, %v260, 5
      %v279 = vsel %vm277, %v260, 5
      %v280 = vsel %vm261, %v278, 2147483647
      %v281 = vrot.slane %v280, 4
      %vm282 = vcmp.lt.s32.totalorder %v280, %v281
      %v283 = vsel %vm282, %v280, %v281
      %v284 = vrot.slane %v283, 2
      %vm285 = vcmp.lt.s32.totalorder %v283, %v284
      %v286 = vsel %vm285, %v283, %v284
      %v287 = vrot.slane %v286, 1
      %vm288 = vcmp.lt.s32.totalorder %v286, %v287
      %v289 = vsel %vm288, %v286, %v287
      %v290 = vsel %vm261, %v279, 2147483647
      %v291 = vrot.slane %v290, 4
      %vm292 = vcmp.lt.s32.totalorder %v290, %v291
      %v293 = vsel %vm292, %v290, %v291
      %v294 = vrot.slane %v293, 2
      %vm295 = vcmp.lt.s32.totalorder %v293, %v294
      %v296 = vsel %vm295, %v293, %v294
      %v297 = vrot.slane %v296, 1
      %vm298 = vcmp.lt.s32.totalorder %v296, %v297
      %v299 = vsel %vm298, %v296, %v297
      %v300 = vsel %vm257, %v289, 5
      %v301 = vsel %vm258, %v299, 5
      %v302 = vlaneseq
      %v303 = vshrl.u32 %v302, 7
      %v304 = vsub.s32 0, %v303
      %v305 = vrot.slane %v249, %v304
      %v306 = vlaneseq
      %v307 = vshrl.u32 %v306, 7
      %v308 = vsub.s32 1, %v307
      %v309 = vrot.slane %v249, %v308
      %v310 = vsel %vm257, %v305, 5
      %v311 = vsel %vm258, %v309, 5
      %vm312 = vcmp.eq.s32.totalorder %v300, %v260
      %vm313 = vcmp.eq.s32.totalorder %v301, %v260
      %v314 = vlaneseq
      %v315 = vshrl.u32 %v314, 7
      %v316 = vsub.s32 0, %v315
      %v317 = vrot.slane %v310, %v316
      %v318 = vlaneseq
      %v319 = vshrl.u32 %v318, 7
      %v320 = vsub.s32 0, %v319
      %v321 = vrot.slane %v311, %v320
      %vm322 = vcmp.eq.s32.totalorder %v317, %v260
      %vm323 = vcmp.eq.s32.totalorder %v321, %v260
      %vm324 = vmand %vm312, %vm322
      %vm325 = vmand %vm313, %vm323
      %v326 = vsel %vm324, 1, 0
      %v327 = vsel %vm325, 1, 0
      %vm328 = vmor %vm312, %vm322
      %vm329 = vmor %vm313, %vm323
      %v330 = vsel %vm328, 1, 0
      %v331 = vsel %vm329, 1, 0
      %v332 = vadd.s32 %v326, %v327
      %v333 = vadd.s32 %v330, %v331
      %v334 = vld [vmem:[%s236] sm:$0x1f]
      %v335 = vadd.s32 %v334, %v332
      %336 = vst [vmem:[%s236] sm:$0x1f] %v335
      %v337 = vld [vmem:[%s240] sm:$0x1f]
      %v338 = vadd.s32 %v337, %v333
      %339 = vst [vmem:[%s240] sm:$0x1f] %v338
      %p340 = scmp.lt.s32.totalorder %s19, 1
      %s341 = scalar_select %p340, %s19, 1
      %s342 = smul.addr %s341, 8
      %s343 = scalar_lea.vmem %s2, %s342
      %p344 = scmp.lt.s32.totalorder %s19, 1
      %s345 = scalar_select %p344, %s19, 1
      %s346 = smul.addr %s345, 8
      %s347 = scalar_lea.vmem %s3, %s346
      // Predicated region
      $region33: #{tpu_custom_call.1} parent=27 // pred_check
        %p348 = pneg %p101
      $region34: #{tpu_custom_call.1} parent=27 // pred_check_branch
        %350 = sbr.rel (%p348) target = $region36
      $region35: #{tpu_custom_call.1} parent=27 // pred_region
        _
      $region36: #{tpu_custom_call.1} parent=27 // pred_fallthru
        _
      // Predicated region
      $region37: #{tpu_custom_call.1} parent=27 // pred_check
        %p351 = pneg %p127
      $region38: #{tpu_custom_call.1} parent=27 // pred_check_branch
        %353 = sbr.rel (%p351) target = $region40
      $region39: #{tpu_custom_call.1} parent=27 // pred_region
        _
      $region40: #{tpu_custom_call.1} parent=27 // pred_fallthru
        _
    $region28: #{tpu_custom_call.1} parent=5 // pred_fallthru
      _
    %p354 = scmp.le.s32.totalorder 2, %s10
    // Predicated region
    $region41: #{tpu_custom_call.1} parent=5 // pred_check
      %p355 = pneg %p354
    $region42: #{tpu_custom_call.1} parent=5 // pred_check_branch
      %357 = sbr.rel (%p355) target = $region44
    $region43: #{tpu_custom_call.1} parent=5 // pred_region
      %s358 = ssub.s32 %s10, 2
      // Predicated region
      $region45: #{tpu_custom_call.1} parent=43 // pred_check
        %p359 = pneg %p107
      $region46: #{tpu_custom_call.1} parent=43 // pred_check_branch
        %361 = sbr.rel (%p359) target = $region48
      $region47: #{tpu_custom_call.1} parent=43 // pred_region
        %p362 = scmp.lt.s32.totalorder %s21, 1
        %s363 = scalar_select %p362, %s21, 1
        %s364 = smul.addr %s363, 8
        %s365 = scalar_lea.vmem %s2, %s364
      $region48: #{tpu_custom_call.1} parent=43 // pred_fallthru
        _
      // Predicated region
      $region49: #{tpu_custom_call.1} parent=43 // pred_check
        %p366 = pneg %p133
      $region50: #{tpu_custom_call.1} parent=43 // pred_check_branch
        %368 = sbr.rel (%p366) target = $region52
      $region51: #{tpu_custom_call.1} parent=43 // pred_region
        %p369 = scmp.lt.s32.totalorder %s21, 1
        %s370 = scalar_select %p369, %s21, 1
        %s371 = smul.addr %s370, 8
        %s372 = scalar_lea.vmem %s3, %s371
      $region52: #{tpu_custom_call.1} parent=43 // pred_fallthru
        _
    $region44: #{tpu_custom_call.1} parent=5 // pred_fallthru
      _
  $region6: #{tpu_custom_call.1} parent=0 // loop_footer
    %s14 = sadd.s32 1, %s10
  $region7: #{tpu_custom_call.1} parent=0 // loop_footer_branch
    %9 = sbr.rel target = $region3
  $region8: #{tpu_custom_call.1} parent=0 // loop_exit
    _

</llo_original>
